<compile_context>
chip_gen: v6e
topology: v6e:2x2x1
jax: 0.10.0
libtpu: 0.0.40
codegen_flags: <defaults>
</compile_context>

<pallas_src>
import math
import functools

import jax
import jax.numpy as jnp
from jax import lax
from jax.experimental import pallas as pl
from jax.experimental.pallas import tpu as pltpu


def ffn_kernel(x_ref, w_in_ref, b_in_ref, w_dw_ref, b_dw_ref, w_out_ref, b_out_ref,
               ml_ref, mr_ref, o_ref, *, H, W, HID):
    HW = H * W

    # ---- project_in: 1x1 conv == (HID, C) @ (C, HW) matmul, bf16 operands, f32 acc ----
    x = x_ref[0]                                                        # (C, HW) bf16
    h = jnp.dot(w_in_ref[...], x, preferred_element_type=jnp.float32)  # (HID, HW) f32
    h = h + b_in_ref[...]                                               # bias (HID, 1)
    hb = h.astype(jnp.bfloat16)

    # ---- 3x3 conv (padding=1) ----
    # Row shifts (ky): shift the flattened spatial axis by +/-W with zero fill.
    zw = jnp.zeros((HID, W), jnp.bfloat16)
    rows = (
        jnp.concatenate([zw, hb[:, :HW - W]], axis=1),   # h(y-1, x)  -> ky = 0
        hb,                                              # h(y,   x)  -> ky = 1
        jnp.concatenate([hb[:, W:], zw], axis=1),        # h(y+1, x)  -> ky = 2
    )

    # Per-kx partials: q_kx = sum_ky  W[ky, kx] @ rows[ky]    (9 MXU matmuls, no copies)
    def qpart(kx):
        acc = jnp.dot(w_dw_ref[kx], rows[0], preferred_element_type=jnp.float32)
        acc = acc + jnp.dot(w_dw_ref[3 + kx], rows[1], preferred_element_type=jnp.float32)
        acc = acc + jnp.dot(w_dw_ref[6 + kx], rows[2], preferred_element_type=jnp.float32)
        return acc                                        # (HID, HW) f32

    q0, q1, q2 = qpart(0), qpart(1), qpart(2)

    # Column shifts (kx): out(y,x) = q0(y,x-1) + q1(y,x) + q2(y,x+1); masks zero the
    # positions that wrapped across a row boundary (masks are precomputed host-side).
    z1 = jnp.zeros((HID, 1), jnp.float32)
    conv = (jnp.concatenate([z1, q0[:, :HW - 1]], axis=1) * ml_ref[...]
            + q1
            + jnp.concatenate([q2[:, 1:], z1], axis=1) * mr_ref[...])
    conv = conv + b_dw_ref[...]                           # bias (HID, 1)

    # ---- exact GELU (erf-based, matches F.gelu default) ----
    g = 0.5 * conv * (1.0 + lax.erf(conv * (1.0 / math.sqrt(2.0))))

    # ---- project_out: 1x1 conv == (C, HID) @ (HID, HW) matmul ----
    y = jnp.dot(w_out_ref[...], g.astype(jnp.bfloat16),
                preferred_element_type=jnp.float32)       # (C, HW) f32
    y = y + b_out_ref[...]                                # bias (C, 1)
    o_ref[0] = y.astype(o_ref.dtype)


def feedforward_pallas(x_nchw, params):
    """params: w_in (HID,C) bf16, b_in (HID,1) f32, w_dw (9,HID,HID) bf16 [idx=ky*3+kx],
    b_dw (HID,1) f32, w_out (C,HID) bf16, b_out (C,1) f32. Input/output NCHW f32."""
    B, C, H, W = x_nchw.shape
    HID = params["w_in"].shape[0]
    HW = H * W

    # channels-first, flattened spatial -> lane-dense blocks; reshapes only (no transpose).
    x2 = x_nchw.reshape(B, C, HW).astype(jnp.bfloat16)

    # Column-boundary masks for the +/-1 spatial shifts (computed once, tiny).
    xcoord = jnp.arange(HW, dtype=jnp.int32) % W
    mask_l = (xcoord > 0).astype(jnp.float32)[None, :]        # valid where x > 0
    mask_r = (xcoord < W - 1).astype(jnp.float32)[None, :]    # valid where x < W-1

    kernel = functools.partial(ffn_kernel, H=H, W=W, HID=HID)

    out = pl.pallas_call(
        kernel,
        out_shape=jax.ShapeDtypeStruct((B, C, HW), x_nchw.dtype),
        grid=(B,),
        in_specs=[
            pl.BlockSpec((1, C, HW), lambda b: (b, 0, 0)),        # x
            pl.BlockSpec((HID, C), lambda b: (0, 0)),             # w_in
            pl.BlockSpec((HID, 1), lambda b: (0, 0)),             # b_in
            pl.BlockSpec((9, HID, HID), lambda b: (0, 0, 0)),     # w_dw (9 taps)
            pl.BlockSpec((HID, 1), lambda b: (0, 0)),             # b_dw
            pl.BlockSpec((C, HID), lambda b: (0, 0)),             # w_out
            pl.BlockSpec((C, 1), lambda b: (0, 0)),               # b_out
            pl.BlockSpec((1, HW), lambda b: (0, 0)),              # mask left
            pl.BlockSpec((1, HW), lambda b: (0, 0)),              # mask right
        ],
        out_specs=pl.BlockSpec((1, C, HW), lambda b: (b, 0, 0)),
        compiler_params=pltpu.CompilerParams(
            dimension_semantics=("parallel",),
            vmem_limit_bytes=48 * 1024 * 1024,
        ),
    )(x2, params["w_in"], params["b_in"], params["w_dw"], params["b_dw"],
      params["w_out"], params["b_out"], mask_l, mask_r)

    # TODO(synk): for large H*W the per-batch block should be row-tiled with a halo to fit
    # v7x's 64 MiB VMEM; at these shapes a single spatial block per grid step is fine.
    return out.reshape(B, C, H, W)


def feedforward_module(x, t, params):
    """One submodule of the sequential container: (x, t) -> (x, moe_loss)."""
    # TODO(synk): `t` (time embedding) and data-dependent MoE gating / aux-loss of the
    # original DRNet submodules are not modeled; each block is a FeedForward, moe_loss = 0.
    del t
    return feedforward_pallas(x, params), jnp.zeros((), jnp.float32)


def sequential_with_moe_loss_time(x, t, module_params_list):
    """Semantics of SequentialWithMoELoss_time.forward: chain modules, sum MoE losses."""
    moe_layer_loss = jnp.zeros((), jnp.float32)
    for params in module_params_list:
        x, moe_loss = feedforward_module(x, t, params)
        moe_layer_loss = moe_layer_loss + moe_loss
    return x, moe_layer_loss


def make_params(key, dim, ffn_expansion_factor):
    """Deterministic synthetic parameters with the same shapes as the PyTorch module."""
    hidden = int(dim * ffn_expansion_factor)
    ks = jax.random.split(key, 6)
    # PyTorch conv weight layouts: project_in (hid,dim,1,1), conv3x3 (hid,hid,3,3),
    # project_out (dim,hid,1,1).
    w_in_t = jax.random.normal(ks[0], (hidden, dim, 1, 1), jnp.float32) * 0.05
    w_dw_t = jax.random.normal(ks[1], (hidden, hidden, 3, 3), jnp.float32) * 0.05
    w_out_t = jax.random.normal(ks[2], (dim, hidden, 1, 1), jnp.float32) * 0.05
    b_in = jax.random.normal(ks[3], (hidden,), jnp.float32) * 0.05
    b_dw = jax.random.normal(ks[4], (hidden,), jnp.float32) * 0.05
    b_out = jax.random.normal(ks[5], (dim,), jnp.float32) * 0.05

    params = {
        "w_in": w_in_t[:, :, 0, 0].astype(jnp.bfloat16),                      # (hid, dim)
        "b_in": b_in[:, None],                                                 # (hid, 1)
        # tap idx = ky*3 + kx holds the (out_ch, in_ch) matrix for offset (ky-1, kx-1)
        "w_dw": jnp.transpose(w_dw_t, (2, 3, 0, 1)).reshape(9, hidden, hidden)
                    .astype(jnp.bfloat16),
        "b_dw": b_dw[:, None],                                                 # (hid, 1)
        "w_out": w_out_t[:, :, 0, 0].astype(jnp.bfloat16),                    # (dim, hid)
        "b_out": b_out[:, None],                                               # (dim, 1)
    }
    torch_style = {"w_in": w_in_t, "w_dw": w_dw_t, "w_out": w_out_t,
                   "b_in": b_in, "b_dw": b_dw, "b_out": b_out}
    return params, torch_style


def feedforward_reference(x_nchw, tw):
    """Pure-JAX f32 reference of the PyTorch forward (NCHW convs)."""
    dn = lax.conv_dimension_numbers(x_nchw.shape, tw["w_in"].shape, ("NCHW", "OIHW", "NCHW"))
    h = lax.conv_general_dilated(x_nchw, tw["w_in"], (1, 1), "VALID", dimension_numbers=dn)
    h = h + tw["b_in"][None, :, None, None]
    dn2 = lax.conv_dimension_numbers(h.shape, tw["w_dw"].shape, ("NCHW", "OIHW", "NCHW"))
    h = lax.conv_general_dilated(h, tw["w_dw"], (1, 1), ((1, 1), (1, 1)), dimension_numbers=dn2)
    h = h + tw["b_dw"][None, :, None, None]
    h = jax.nn.gelu(h, approximate=False)
    dn3 = lax.conv_dimension_numbers(h.shape, tw["w_out"].shape, ("NCHW", "OIHW", "NCHW"))
    y = lax.conv_general_dilated(h, tw["w_out"], (1, 1), "VALID", dimension_numbers=dn3)
    y = y + tw["b_out"][None, :, None, None]
    return y


if __name__ == "__main__":
    B, dim, H, W = 2, 8, 16, 16
    ffn_expansion_factor = 2

    key = jax.random.PRNGKey(0)
    kx_, kp1, kp2 = jax.random.split(key, 3)
    x = jax.random.normal(kx_, (B, dim, H, W), jnp.float32)
    t = jnp.zeros((B,), jnp.float32)   # time input threaded through the sequential wrapper

    p1, tw1 = make_params(kp1, dim, ffn_expansion_factor)
    p2, tw2 = make_params(kp2, dim, ffn_expansion_factor)

    out, moe_loss = sequential_with_moe_loss_time(x, t, [p1, p2])
    out = jax.block_until_ready(out)

    ref = feedforward_reference(feedforward_reference(x, tw1), tw2)
    assert out.shape == ref.shape == (B, dim, H, W)
    # bf16 matmul operands (f32 accumulation) -> looser tolerance than the pure-f32 version.
    max_err = float(jnp.max(jnp.abs(out - ref)))
    assert jnp.allclose(out, ref, atol=2e-2, rtol=2e-2), max_err
    assert float(moe_loss) == 0.0

    print("KERNEL_OK")
</pallas_src>

<mosaic_0001>
module attributes {stable_mosaic.version = 11 : i64} {
  func.func @ffn_kernel(%arg0: i32, %arg1: memref<1x8x256xbf16, #tpu.memory_space<vmem>>, %arg2: memref<16x8xbf16, #tpu.memory_space<vmem>>, %arg3: memref<16x1xf32, #tpu.memory_space<vmem>>, %arg4: memref<9x16x16xbf16, #tpu.memory_space<vmem>>, %arg5: memref<16x1xf32, #tpu.memory_space<vmem>>, %arg6: memref<8x16xbf16, #tpu.memory_space<vmem>>, %arg7: memref<8x1xf32, #tpu.memory_space<vmem>>, %arg8: memref<1x256xf32, #tpu.memory_space<vmem>>, %arg9: memref<1x256xf32, #tpu.memory_space<vmem>>, %arg10: memref<1x8x256xf32, #tpu.memory_space<vmem>>) attributes {dimension_semantics = [#tpu.dimension_semantics<parallel>], iteration_bounds = array<i64: 2>, scalar_prefetch = 0 : i64, scratch_operands = 0 : i64, tpu.core_type = #tpu.core_type<tc>, window_params = [{transform_indices = @transform_0, window_bounds = array<i64: 1, 8, 256>}, {pipeline_mode = #tpu.pipeline_mode<synchronous>, transform_indices = @transform_1, window_bounds = array<i64: 16, 8>}, {pipeline_mode = #tpu.pipeline_mode<synchronous>, transform_indices = @transform_2, window_bounds = array<i64: 16, 1>}, {pipeline_mode = #tpu.pipeline_mode<synchronous>, transform_indices = @transform_3, window_bounds = array<i64: 9, 16, 16>}, {pipeline_mode = #tpu.pipeline_mode<synchronous>, transform_indices = @transform_4, window_bounds = array<i64: 16, 1>}, {pipeline_mode = #tpu.pipeline_mode<synchronous>, transform_indices = @transform_5, window_bounds = array<i64: 8, 16>}, {pipeline_mode = #tpu.pipeline_mode<synchronous>, transform_indices = @transform_6, window_bounds = array<i64: 8, 1>}, {pipeline_mode = #tpu.pipeline_mode<synchronous>, transform_indices = @transform_7, window_bounds = array<i64: 1, 256>}, {pipeline_mode = #tpu.pipeline_mode<synchronous>, transform_indices = @transform_8, window_bounds = array<i64: 1, 256>}, {transform_indices = @transform_9, window_bounds = array<i64: 1, 8, 256>}]} {
    %c0 = arith.constant 0 : index
    %c0_0 = arith.constant 0 : index
    %c0_1 = arith.constant 0 : index
    %0 = vector.load %arg1[%c0, %c0_0, %c0_1] : memref<1x8x256xbf16, #tpu.memory_space<vmem>>, vector<1x8x256xbf16>
    %1 = vector.shape_cast %0 : vector<1x8x256xbf16> to vector<8x256xbf16>
    %c0_2 = arith.constant 0 : index
    %c0_3 = arith.constant 0 : index
    %2 = vector.load %arg2[%c0_2, %c0_3] : memref<16x8xbf16, #tpu.memory_space<vmem>>, vector<16x8xbf16>
    %cst = arith.constant dense<0.000000e+00> : vector<16x256xf32>
    %3 = tpu.matmul %2, %1, %cst {dimension_numbers = #tpu.dot_dimension_numbers<[1], [0], [0], [1], [0, 0, 1, 1], [], []>} : vector<16x8xbf16>, vector<8x256xbf16>, vector<16x256xf32> -> vector<16x256xf32>
    %c0_4 = arith.constant 0 : index
    %c0_5 = arith.constant 0 : index
    %4 = vector.load %arg3[%c0_4, %c0_5] : memref<16x1xf32, #tpu.memory_space<vmem>>, vector<16x1xf32>
    %5 = vector.broadcast %4 : vector<16x1xf32> to vector<16x256xf32>
    %6 = arith.addf %3, %5 : vector<16x256xf32>
    %7 = arith.truncf %6 : vector<16x256xf32> to vector<16x256xbf16>
    %cst_6 = arith.constant 0.000000e+00 : bf16
    %8 = vector.broadcast %cst_6 : bf16 to vector<16x16xbf16>
    %9 = vector.extract_strided_slice %7 {offsets = [0, 0], sizes = [16, 240], strides = [1, 1]} : vector<16x256xbf16> to vector<16x240xbf16>
    %10 = tpu.concatenate %8, %9 in 1 : vector<16x16xbf16>, vector<16x240xbf16> -> vector<16x256xbf16>
    %11 = vector.extract_strided_slice %7 {offsets = [0, 16], sizes = [16, 240], strides = [1, 1]} : vector<16x256xbf16> to vector<16x240xbf16>
    %12 = tpu.concatenate %11, %8 in 1 : vector<16x240xbf16>, vector<16x16xbf16> -> vector<16x256xbf16>
    %c0_7 = arith.constant 0 : index
    %c0_8 = arith.constant 0 : index
    %c0_9 = arith.constant 0 : index
    %13 = vector.load %arg4[%c0_7, %c0_8, %c0_9] : memref<9x16x16xbf16, #tpu.memory_space<vmem>>, vector<1x16x16xbf16>
    %14 = vector.shape_cast %13 : vector<1x16x16xbf16> to vector<16x16xbf16>
    %cst_10 = arith.constant dense<0.000000e+00> : vector<16x256xf32>
    %15 = tpu.matmul %14, %10, %cst_10 {dimension_numbers = #tpu.dot_dimension_numbers<[1], [0], [0], [1], [0, 0, 1, 1], [], []>} : vector<16x16xbf16>, vector<16x256xbf16>, vector<16x256xf32> -> vector<16x256xf32>
    %c3 = arith.constant 3 : index
    %c0_11 = arith.constant 0 : index
    %c0_12 = arith.constant 0 : index
    %16 = vector.load %arg4[%c3, %c0_11, %c0_12] : memref<9x16x16xbf16, #tpu.memory_space<vmem>>, vector<1x16x16xbf16>
    %17 = vector.shape_cast %16 : vector<1x16x16xbf16> to vector<16x16xbf16>
    %cst_13 = arith.constant dense<0.000000e+00> : vector<16x256xf32>
    %18 = tpu.matmul %17, %7, %cst_13 {dimension_numbers = #tpu.dot_dimension_numbers<[1], [0], [0], [1], [0, 0, 1, 1], [], []>} : vector<16x16xbf16>, vector<16x256xbf16>, vector<16x256xf32> -> vector<16x256xf32>
    %19 = arith.addf %15, %18 : vector<16x256xf32>
    %c6 = arith.constant 6 : index
    %c0_14 = arith.constant 0 : index
    %c0_15 = arith.constant 0 : index
    %20 = vector.load %arg4[%c6, %c0_14, %c0_15] : memref<9x16x16xbf16, #tpu.memory_space<vmem>>, vector<1x16x16xbf16>
    %21 = vector.shape_cast %20 : vector<1x16x16xbf16> to vector<16x16xbf16>
    %cst_16 = arith.constant dense<0.000000e+00> : vector<16x256xf32>
    %22 = tpu.matmul %21, %12, %cst_16 {dimension_numbers = #tpu.dot_dimension_numbers<[1], [0], [0], [1], [0, 0, 1, 1], [], []>} : vector<16x16xbf16>, vector<16x256xbf16>, vector<16x256xf32> -> vector<16x256xf32>
    %23 = arith.addf %19, %22 : vector<16x256xf32>
    %c1 = arith.constant 1 : index
    %c0_17 = arith.constant 0 : index
    %c0_18 = arith.constant 0 : index
    %24 = vector.load %arg4[%c1, %c0_17, %c0_18] : memref<9x16x16xbf16, #tpu.memory_space<vmem>>, vector<1x16x16xbf16>
    %25 = vector.shape_cast %24 : vector<1x16x16xbf16> to vector<16x16xbf16>
    %cst_19 = arith.constant dense<0.000000e+00> : vector<16x256xf32>
    %26 = tpu.matmul %25, %10, %cst_19 {dimension_numbers = #tpu.dot_dimension_numbers<[1], [0], [0], [1], [0, 0, 1, 1], [], []>} : vector<16x16xbf16>, vector<16x256xbf16>, vector<16x256xf32> -> vector<16x256xf32>
    %c4 = arith.constant 4 : index
    %c0_20 = arith.constant 0 : index
    %c0_21 = arith.constant 0 : index
    %27 = vector.load %arg4[%c4, %c0_20, %c0_21] : memref<9x16x16xbf16, #tpu.memory_space<vmem>>, vector<1x16x16xbf16>
    %28 = vector.shape_cast %27 : vector<1x16x16xbf16> to vector<16x16xbf16>
    %cst_22 = arith.constant dense<0.000000e+00> : vector<16x256xf32>
    %29 = tpu.matmul %28, %7, %cst_22 {dimension_numbers = #tpu.dot_dimension_numbers<[1], [0], [0], [1], [0, 0, 1, 1], [], []>} : vector<16x16xbf16>, vector<16x256xbf16>, vector<16x256xf32> -> vector<16x256xf32>
    %30 = arith.addf %26, %29 : vector<16x256xf32>
    %c7 = arith.constant 7 : index
    %c0_23 = arith.constant 0 : index
    %c0_24 = arith.constant 0 : index
    %31 = vector.load %arg4[%c7, %c0_23, %c0_24] : memref<9x16x16xbf16, #tpu.memory_space<vmem>>, vector<1x16x16xbf16>
    %32 = vector.shape_cast %31 : vector<1x16x16xbf16> to vector<16x16xbf16>
    %cst_25 = arith.constant dense<0.000000e+00> : vector<16x256xf32>
    %33 = tpu.matmul %32, %12, %cst_25 {dimension_numbers = #tpu.dot_dimension_numbers<[1], [0], [0], [1], [0, 0, 1, 1], [], []>} : vector<16x16xbf16>, vector<16x256xbf16>, vector<16x256xf32> -> vector<16x256xf32>
    %34 = arith.addf %30, %33 : vector<16x256xf32>
    %c2 = arith.constant 2 : index
    %c0_26 = arith.constant 0 : index
    %c0_27 = arith.constant 0 : index
    %35 = vector.load %arg4[%c2, %c0_26, %c0_27] : memref<9x16x16xbf16, #tpu.memory_space<vmem>>, vector<1x16x16xbf16>
    %36 = vector.shape_cast %35 : vector<1x16x16xbf16> to vector<16x16xbf16>
    %cst_28 = arith.constant dense<0.000000e+00> : vector<16x256xf32>
    %37 = tpu.matmul %36, %10, %cst_28 {dimension_numbers = #tpu.dot_dimension_numbers<[1], [0], [0], [1], [0, 0, 1, 1], [], []>} : vector<16x16xbf16>, vector<16x256xbf16>, vector<16x256xf32> -> vector<16x256xf32>
    %c5 = arith.constant 5 : index
    %c0_29 = arith.constant 0 : index
    %c0_30 = arith.constant 0 : index
    %38 = vector.load %arg4[%c5, %c0_29, %c0_30] : memref<9x16x16xbf16, #tpu.memory_space<vmem>>, vector<1x16x16xbf16>
    %39 = vector.shape_cast %38 : vector<1x16x16xbf16> to vector<16x16xbf16>
    %cst_31 = arith.constant dense<0.000000e+00> : vector<16x256xf32>
    %40 = tpu.matmul %39, %7, %cst_31 {dimension_numbers = #tpu.dot_dimension_numbers<[1], [0], [0], [1], [0, 0, 1, 1], [], []>} : vector<16x16xbf16>, vector<16x256xbf16>, vector<16x256xf32> -> vector<16x256xf32>
    %41 = arith.addf %37, %40 : vector<16x256xf32>
    %c8 = arith.constant 8 : index
    %c0_32 = arith.constant 0 : index
    %c0_33 = arith.constant 0 : index
    %42 = vector.load %arg4[%c8, %c0_32, %c0_33] : memref<9x16x16xbf16, #tpu.memory_space<vmem>>, vector<1x16x16xbf16>
    %43 = vector.shape_cast %42 : vector<1x16x16xbf16> to vector<16x16xbf16>
    %cst_34 = arith.constant dense<0.000000e+00> : vector<16x256xf32>
    %44 = tpu.matmul %43, %12, %cst_34 {dimension_numbers = #tpu.dot_dimension_numbers<[1], [0], [0], [1], [0, 0, 1, 1], [], []>} : vector<16x16xbf16>, vector<16x256xbf16>, vector<16x256xf32> -> vector<16x256xf32>
    %45 = arith.addf %41, %44 : vector<16x256xf32>
    %cst_35 = arith.constant 0.000000e+00 : f32
    %46 = vector.broadcast %cst_35 : f32 to vector<16x1xf32>
    %47 = vector.extract_strided_slice %23 {offsets = [0, 0], sizes = [16, 255], strides = [1, 1]} : vector<16x256xf32> to vector<16x255xf32>
    %48 = tpu.concatenate %46, %47 in 1 : vector<16x1xf32>, vector<16x255xf32> -> vector<16x256xf32>
    %c0_36 = arith.constant 0 : index
    %c0_37 = arith.constant 0 : index
    %49 = vector.load %arg8[%c0_36, %c0_37] : memref<1x256xf32, #tpu.memory_space<vmem>>, vector<1x256xf32>
    %50 = vector.broadcast %49 : vector<1x256xf32> to vector<16x256xf32>
    %51 = arith.mulf %48, %50 : vector<16x256xf32>
    %52 = arith.addf %51, %34 : vector<16x256xf32>
    %53 = vector.extract_strided_slice %45 {offsets = [0, 1], sizes = [16, 255], strides = [1, 1]} : vector<16x256xf32> to vector<16x255xf32>
    %54 = tpu.concatenate %53, %46 in 1 : vector<16x255xf32>, vector<16x1xf32> -> vector<16x256xf32>
    %c0_38 = arith.constant 0 : index
    %c0_39 = arith.constant 0 : index
    %55 = vector.load %arg9[%c0_38, %c0_39] : memref<1x256xf32, #tpu.memory_space<vmem>>, vector<1x256xf32>
    %56 = vector.broadcast %55 : vector<1x256xf32> to vector<16x256xf32>
    %57 = arith.mulf %54, %56 : vector<16x256xf32>
    %58 = arith.addf %52, %57 : vector<16x256xf32>
    %c0_40 = arith.constant 0 : index
    %c0_41 = arith.constant 0 : index
    %59 = vector.load %arg5[%c0_40, %c0_41] : memref<16x1xf32, #tpu.memory_space<vmem>>, vector<16x1xf32>
    %60 = vector.broadcast %59 : vector<16x1xf32> to vector<16x256xf32>
    %61 = arith.addf %58, %60 : vector<16x256xf32>
    %cst_42 = arith.constant 5.000000e-01 : f32
    %62 = vector.broadcast %cst_42 : f32 to vector<16x256xf32>
    %63 = arith.mulf %62, %61 : vector<16x256xf32>
    %cst_43 = arith.constant 0.707106769 : f32
    %64 = vector.broadcast %cst_43 : f32 to vector<16x256xf32>
    %65 = arith.mulf %61, %64 : vector<16x256xf32>
    %66 = math.erf %65 : vector<16x256xf32>
    %cst_44 = arith.constant 1.000000e+00 : f32
    %67 = vector.broadcast %cst_44 : f32 to vector<16x256xf32>
    %68 = arith.addf %67, %66 : vector<16x256xf32>
    %69 = arith.mulf %63, %68 : vector<16x256xf32>
    %c0_45 = arith.constant 0 : index
    %c0_46 = arith.constant 0 : index
    %70 = vector.load %arg6[%c0_45, %c0_46] : memref<8x16xbf16, #tpu.memory_space<vmem>>, vector<8x16xbf16>
    %71 = arith.truncf %69 : vector<16x256xf32> to vector<16x256xbf16>
    %cst_47 = arith.constant dense<0.000000e+00> : vector<8x256xf32>
    %72 = tpu.matmul %70, %71, %cst_47 {dimension_numbers = #tpu.dot_dimension_numbers<[1], [0], [0], [1], [0, 0, 1, 1], [], []>} : vector<8x16xbf16>, vector<16x256xbf16>, vector<8x256xf32> -> vector<8x256xf32>
    %c0_48 = arith.constant 0 : index
    %c0_49 = arith.constant 0 : index
    %73 = vector.load %arg7[%c0_48, %c0_49] : memref<8x1xf32, #tpu.memory_space<vmem>>, vector<8x1xf32>
    %74 = vector.broadcast %73 : vector<8x1xf32> to vector<8x256xf32>
    %75 = arith.addf %72, %74 : vector<8x256xf32>
    %c0_50 = arith.constant 0 : index
    %c0_51 = arith.constant 0 : index
    %c0_52 = arith.constant 0 : index
    %76 = vector.load %arg10[%c0_50, %c0_51, %c0_52] : memref<1x8x256xf32, #tpu.memory_space<vmem>>, vector<1x8x256xf32>
    %77 = vector.shape_cast %76 : vector<1x8x256xf32> to vector<8x256xf32>
    %78 = vector.shape_cast %75 : vector<8x256xf32> to vector<1x8x256xf32>
    tpu.vector_store %arg10[%c0_50, %c0_51, %c0_52], %78 {strides = array<i32>} : memref<1x8x256xf32, #tpu.memory_space<vmem>>, vector<1x8x256xf32>,
    return
  }
  func.func @transform_0(%arg0: i32) -> (i32, i32, i32) {
    %c0_i32 = arith.constant 0 : i32
    %c0_i32_0 = arith.constant 0 : i32
    %c0_i32_1 = arith.constant 0 : i32
    return %arg0, %c0_i32, %c0_i32_0 : i32, i32, i32
  }
  func.func @transform_1(%arg0: i32) -> (i32, i32) {
    %c0_i32 = arith.constant 0 : i32
    %c0_i32_0 = arith.constant 0 : i32
    %c0_i32_1 = arith.constant 0 : i32
    return %c0_i32, %c0_i32_0 : i32, i32
  }
  func.func @transform_2(%arg0: i32) -> (i32, i32) {
    %c0_i32 = arith.constant 0 : i32
    %c0_i32_0 = arith.constant 0 : i32
    %c0_i32_1 = arith.constant 0 : i32
    return %c0_i32, %c0_i32_0 : i32, i32
  }
  func.func @transform_3(%arg0: i32) -> (i32, i32, i32) {
    %c0_i32 = arith.constant 0 : i32
    %c0_i32_0 = arith.constant 0 : i32
    %c0_i32_1 = arith.constant 0 : i32
    %c0_i32_2 = arith.constant 0 : i32
    return %c0_i32, %c0_i32_0, %c0_i32_1 : i32, i32, i32
  }
  func.func @transform_4(%arg0: i32) -> (i32, i32) {
    %c0_i32 = arith.constant 0 : i32
    %c0_i32_0 = arith.constant 0 : i32
    %c0_i32_1 = arith.constant 0 : i32
    return %c0_i32, %c0_i32_0 : i32, i32
  }
  func.func @transform_5(%arg0: i32) -> (i32, i32) {
    %c0_i32 = arith.constant 0 : i32
    %c0_i32_0 = arith.constant 0 : i32
    %c0_i32_1 = arith.constant 0 : i32
    return %c0_i32, %c0_i32_0 : i32, i32
  }
  func.func @transform_6(%arg0: i32) -> (i32, i32) {
    %c0_i32 = arith.constant 0 : i32
    %c0_i32_0 = arith.constant 0 : i32
    %c0_i32_1 = arith.constant 0 : i32
    return %c0_i32, %c0_i32_0 : i32, i32
  }
  func.func @transform_7(%arg0: i32) -> (i32, i32) {
    %c0_i32 = arith.constant 0 : i32
    %c0_i32_0 = arith.constant 0 : i32
    %c0_i32_1 = arith.constant 0 : i32
    return %c0_i32, %c0_i32_0 : i32, i32
  }
  func.func @transform_8(%arg0: i32) -> (i32, i32) {
    %c0_i32 = arith.constant 0 : i32
    %c0_i32_0 = arith.constant 0 : i32
    %c0_i32_1 = arith.constant 0 : i32
    return %c0_i32, %c0_i32_0 : i32, i32
  }
  func.func @transform_9(%arg0: i32) -> (i32, i32, i32) {
    %c0_i32 = arith.constant 0 : i32
    %c0_i32_0 = arith.constant 0 : i32
    %c0_i32_1 = arith.constant 0 : i32
    return %arg0, %c0_i32, %c0_i32_0 : i32, i32, i32
  }
}

</mosaic_0001>

<llo_original>
// kernel: tpu_custom_call.1
$region0: #{tpu_custom_call.1}
  #allocation0 [shape = 'u32[]', space=smem, size = 0x4, offset = 0x4, fixed_abs, tag = 'smem constant byte address 0x4 - core index']
  #allocation1 [shape = 'u32[144,128]{1,0:T(1,128)}', space=vmem, size = 0x12000, scoped, tag = 'internal scratch']
  %s0 = inlined_call_operand.vmem [shape: bf16[2,8,256], index: 0, kind: input, shape index: {}]
  %s1 = inlined_call_operand.vmem [shape: bf16[16,8], index: 1, kind: input, shape index: {}]
  %s2 = inlined_call_operand.vmem [shape: f32[16,1], index: 2, kind: input, shape index: {}]
  %s3 = inlined_call_operand.hbm [shape: bf16[9,16,16], index: 3, kind: input, shape index: {}]
  %s4 = inlined_call_operand.vmem [shape: f32[16,1], index: 4, kind: input, shape index: {}]
  %s5 = inlined_call_operand.vmem [shape: bf16[8,16], index: 5, kind: input, shape index: {}]
  %s6 = inlined_call_operand.vmem [shape: f32[8,1], index: 6, kind: input, shape index: {}]
  %s7 = inlined_call_operand.vmem [shape: f32[1,256], index: 7, kind: input, shape index: {}]
  %s8 = inlined_call_operand.vmem [shape: f32[1,256], index: 8, kind: input, shape index: {}]
  %s9 = inlined_call_operand.hbm [shape: f32[2,8,256], index: 9, kind: output, shape index: {}]
  %s10 = sld [smem:[#allocation0]]
  $region73: #{tpu_custom_call.1} parent=0
    _
  %s12 = ssub.s32 1, %s10
  %s13 = scalar_select 0, %s12, %s10
  $region1: #{tpu_custom_call.1} parent=0
    #allocation2 [shape = 'u8[36864]{0}', space=vmem, size = 0x9000, scoped, tag = 'input window, operand 3, single buffered']
    #allocation3 [shape = 's32[2]{0}', space=sflag, size = 0x8, scoped, tag = 'scoped memory for tpu_custom_call.1']
    #allocation4 [shape = 's32[2]{0}', space=sflag, size = 0x8, scoped, tag = 'scoped memory for tpu_custom_call.1']
    #allocation5 [shape = 'u8[16384]{0}', space=vmem, size = 0x4000, scoped, tag = 'output window, operand 0']
    %14 = vsyncpa [#allocation3], 0
    %15 = vsyncpa [#allocation4], 0
    %s16 = scalar_lea.sflag [#allocation4], 1
    %17 = vsyncpa %s16, 0
    loop: start=0, step=1, limit=4
    $region2: #{tpu_custom_call.1} parent=1 // loop_pre_header
      _
    $region3: #{tpu_custom_call.1} parent=1 // loop_header
      %s19 = sphi 0, %s23
      %p20 = scmp.ge.s32.totalorder %s19, 4
      %s29 = sphi 0, %s31
      %s32 = sphi 0, %s29
      %s33 = sphi 0, %s32
      %s49 = sphi 0, %s33
      %s53 = sphi 0, %s53
      %s55 = sphi 0, %s53
      %s56 = sphi 0, %s55
      %s70 = sphi 0, %s56
      %s74 = sphi 0, %s74
      %s76 = sphi 0, %s74
      %s77 = sphi 0, %s76
      %s91 = sphi 0, %s77
      %s95 = sphi 0, %s95
      %s97 = sphi 0, %s95
      %s98 = sphi 0, %s97
      %s112 = sphi 0, %s98
      %s116 = sphi 0, %s116
      %s118 = sphi 0, %s116
      %s119 = sphi 0, %s118
      %s133 = sphi 0, %s119
      %s137 = sphi 0, %s137
      %s139 = sphi 0, %s137
      %s140 = sphi 0, %s139
      %s154 = sphi 0, %s140
      %s158 = sphi 0, %s158
      %s160 = sphi 0, %s158
      %s161 = sphi 0, %s160
      %s175 = sphi 0, %s161
      %s179 = sphi 0, %s179
      %s181 = sphi 0, %s179
      %s182 = sphi 0, %s181
      %s196 = sphi 0, %s182
      %s200 = sphi 0, %s200
      %s202 = sphi 0, %s200
      %s203 = sphi 0, %s202
      %s217 = sphi 0, %s203
      %s223 = sphi 0, %s225
      %s226 = sphi 0, %s223
      %s227 = sphi 0, %s226
      %s243 = sphi 0, %s227
    $region4: #{tpu_custom_call.1} parent=1 // loop_header_branch
      %22 = sbr.rel (%p20) target = $region8
    $region5: #{tpu_custom_call.1} parent=1 // loop_body
      %s24 = ssub.s32 %s19, 1
      %s25 = ssub.s32 %s19, 2
      %s26 = sadd.s32 %s19, 1
      %s27 = ssub.s32 %s19, %s26
      %p28 = scmp.eq.s32.totalorder %s27, 0
      %s30 = sadd.s32 %s29, 1
      %s31 = scalar_select %p28, %s29, %s30
      %p34 = pneg %p28
      %p35 = scmp.eq.s32.totalorder %s19, 1
      %p36 = por %p34, %p35
      %p37 = scmp.ne.s32.totalorder %s29, %s32
      %p38 = scmp.eq.s32.totalorder %s19, 0
      %p39 = por %p37, %p38
      %p40 = scmp.ne.s32.totalorder %s29, %s32
      %p41 = scmp.eq.s32.totalorder %s24, 1
      %p42 = por %p40, %p41
      %p43 = scmp.ne.s32.totalorder %s32, %s33
      %p44 = scmp.eq.s32.totalorder %s24, 0
      %p45 = por %p43, %p44
      %p46 = scmp.ne.s32.totalorder %s32, %s33
      %p47 = scmp.eq.s32.totalorder %s25, 1
      %p48 = por %p46, %p47
      %p50 = scmp.ne.s32.totalorder %s33, %s49
      %p51 = scmp.eq.s32.totalorder %s25, 0
      %p52 = por %p50, %p51
      %s54 = sadd.s32 %s53, 1
      %p57 = scmp.eq.s32.totalorder %s19, 1
      %p58 = scmp.ne.s32.totalorder %s53, %s55
      %p59 = scmp.eq.s32.totalorder %s19, 0
      %p60 = por %p58, %p59
      %p61 = scmp.ne.s32.totalorder %s53, %s55
      %p62 = scmp.eq.s32.totalorder %s24, 1
      %p63 = por %p61, %p62
      %p64 = scmp.ne.s32.totalorder %s55, %s56
      %p65 = scmp.eq.s32.totalorder %s24, 0
      %p66 = por %p64, %p65
      %p67 = scmp.ne.s32.totalorder %s55, %s56
      %p68 = scmp.eq.s32.totalorder %s25, 1
      %p69 = por %p67, %p68
      %p71 = scmp.ne.s32.totalorder %s56, %s70
      %p72 = scmp.eq.s32.totalorder %s25, 0
      %p73 = por %p71, %p72
      %s75 = sadd.s32 %s74, 1
      %p78 = scmp.eq.s32.totalorder %s19, 1
      %p79 = scmp.ne.s32.totalorder %s74, %s76
      %p80 = scmp.eq.s32.totalorder %s19, 0
      %p81 = por %p79, %p80
      %p82 = scmp.ne.s32.totalorder %s74, %s76
      %p83 = scmp.eq.s32.totalorder %s24, 1
      %p84 = por %p82, %p83
      %p85 = scmp.ne.s32.totalorder %s76, %s77
      %p86 = scmp.eq.s32.totalorder %s24, 0
      %p87 = por %p85, %p86
      %p88 = scmp.ne.s32.totalorder %s76, %s77
      %p89 = scmp.eq.s32.totalorder %s25, 1
      %p90 = por %p88, %p89
      %p92 = scmp.ne.s32.totalorder %s77, %s91
      %p93 = scmp.eq.s32.totalorder %s25, 0
      %p94 = por %p92, %p93
      %s96 = sadd.s32 %s95, 1
      %p99 = scmp.eq.s32.totalorder %s19, 1
      %p100 = scmp.ne.s32.totalorder %s95, %s97
      %p101 = scmp.eq.s32.totalorder %s19, 0
      %p102 = por %p100, %p101
      %p103 = scmp.ne.s32.totalorder %s95, %s97
      %p104 = scmp.eq.s32.totalorder %s24, 1
      %p105 = por %p103, %p104
      %p106 = scmp.ne.s32.totalorder %s97, %s98
      %p107 = scmp.eq.s32.totalorder %s24, 0
      %p108 = por %p106, %p107
      %p109 = scmp.ne.s32.totalorder %s97, %s98
      %p110 = scmp.eq.s32.totalorder %s25, 1
      %p111 = por %p109, %p110
      %p113 = scmp.ne.s32.totalorder %s98, %s112
      %p114 = scmp.eq.s32.totalorder %s25, 0
      %p115 = por %p113, %p114
      %s117 = sadd.s32 %s116, 1
      %p120 = scmp.eq.s32.totalorder %s19, 1
      %p121 = scmp.ne.s32.totalorder %s116, %s118
      %p122 = scmp.eq.s32.totalorder %s19, 0
      %p123 = por %p121, %p122
      %p124 = scmp.ne.s32.totalorder %s116, %s118
      %p125 = scmp.eq.s32.totalorder %s24, 1
      %p126 = por %p124, %p125
      %p127 = scmp.ne.s32.totalorder %s118, %s119
      %p128 = scmp.eq.s32.totalorder %s24, 0
      %p129 = por %p127, %p128
      %p130 = scmp.ne.s32.totalorder %s118, %s119
      %p131 = scmp.eq.s32.totalorder %s25, 1
      %p132 = por %p130, %p131
      %p134 = scmp.ne.s32.totalorder %s119, %s133
      %p135 = scmp.eq.s32.totalorder %s25, 0
      %p136 = por %p134, %p135
      %s138 = sadd.s32 %s137, 1
      %p141 = scmp.eq.s32.totalorder %s19, 1
      %p142 = scmp.ne.s32.totalorder %s137, %s139
      %p143 = scmp.eq.s32.totalorder %s19, 0
      %p144 = por %p142, %p143
      %p145 = scmp.ne.s32.totalorder %s137, %s139
      %p146 = scmp.eq.s32.totalorder %s24, 1
      %p147 = por %p145, %p146
      %p148 = scmp.ne.s32.totalorder %s139, %s140
      %p149 = scmp.eq.s32.totalorder %s24, 0
      %p150 = por %p148, %p149
      %p151 = scmp.ne.s32.totalorder %s139, %s140
      %p152 = scmp.eq.s32.totalorder %s25, 1
      %p153 = por %p151, %p152
      %p155 = scmp.ne.s32.totalorder %s140, %s154
      %p156 = scmp.eq.s32.totalorder %s25, 0
      %p157 = por %p155, %p156
      %s159 = sadd.s32 %s158, 1
      %p162 = scmp.eq.s32.totalorder %s19, 1
      %p163 = scmp.ne.s32.totalorder %s158, %s160
      %p164 = scmp.eq.s32.totalorder %s19, 0
      %p165 = por %p163, %p164
      %p166 = scmp.ne.s32.totalorder %s158, %s160
      %p167 = scmp.eq.s32.totalorder %s24, 1
      %p168 = por %p166, %p167
      %p169 = scmp.ne.s32.totalorder %s160, %s161
      %p170 = scmp.eq.s32.totalorder %s24, 0
      %p171 = por %p169, %p170
      %p172 = scmp.ne.s32.totalorder %s160, %s161
      %p173 = scmp.eq.s32.totalorder %s25, 1
      %p174 = por %p172, %p173
      %p176 = scmp.ne.s32.totalorder %s161, %s175
      %p177 = scmp.eq.s32.totalorder %s25, 0
      %p178 = por %p176, %p177
      %s180 = sadd.s32 %s179, 1
      %p183 = scmp.eq.s32.totalorder %s19, 1
      %p184 = scmp.ne.s32.totalorder %s179, %s181
      %p185 = scmp.eq.s32.totalorder %s19, 0
      %p186 = por %p184, %p185
      %p187 = scmp.ne.s32.totalorder %s179, %s181
      %p188 = scmp.eq.s32.totalorder %s24, 1
      %p189 = por %p187, %p188
      %p190 = scmp.ne.s32.totalorder %s181, %s182
      %p191 = scmp.eq.s32.totalorder %s24, 0
      %p192 = por %p190, %p191
      %p193 = scmp.ne.s32.totalorder %s181, %s182
      %p194 = scmp.eq.s32.totalorder %s25, 1
      %p195 = por %p193, %p194
      %p197 = scmp.ne.s32.totalorder %s182, %s196
      %p198 = scmp.eq.s32.totalorder %s25, 0
      %p199 = por %p197, %p198
      %s201 = sadd.s32 %s200, 1
      %p204 = scmp.eq.s32.totalorder %s19, 1
      %p205 = scmp.ne.s32.totalorder %s200, %s202
      %p206 = scmp.eq.s32.totalorder %s19, 0
      %p207 = por %p205, %p206
      %p208 = scmp.ne.s32.totalorder %s200, %s202
      %p209 = scmp.eq.s32.totalorder %s24, 1
      %p210 = por %p208, %p209
      %p211 = scmp.ne.s32.totalorder %s202, %s203
      %p212 = scmp.eq.s32.totalorder %s24, 0
      %p213 = por %p211, %p212
      %p214 = scmp.ne.s32.totalorder %s202, %s203
      %p215 = scmp.eq.s32.totalorder %s25, 1
      %p216 = por %p214, %p215
      %p218 = scmp.ne.s32.totalorder %s203, %s217
      %p219 = scmp.eq.s32.totalorder %s25, 0
      %p220 = por %p218, %p219
      %s221 = ssub.s32 %s19, %s26
      %p222 = scmp.eq.s32.totalorder %s221, 0
      %s224 = sadd.s32 %s223, 1
      %s225 = scalar_select %p222, %s223, %s224
      %p228 = pneg %p222
      %p229 = scmp.eq.s32.totalorder %s19, 1
      %p230 = por %p228, %p229
      %p231 = scmp.ne.s32.totalorder %s223, %s226
      %p232 = scmp.eq.s32.totalorder %s19, 0
      %p233 = por %p231, %p232
      %p234 = scmp.ne.s32.totalorder %s223, %s226
      %p235 = scmp.eq.s32.totalorder %s24, 1
      %p236 = por %p234, %p235
      %p237 = scmp.ne.s32.totalorder %s226, %s227
      %p238 = scmp.eq.s32.totalorder %s24, 0
      %p239 = por %p237, %p238
      %p240 = scmp.ne.s32.totalorder %s226, %s227
      %p241 = scmp.eq.s32.totalorder %s25, 1
      %p242 = por %p240, %p241
      %p244 = scmp.ne.s32.totalorder %s227, %s243
      %p245 = scmp.eq.s32.totalorder %s25, 0
      %p246 = por %p244, %p245
      %p247 = scmp.le.s32.totalorder 1, %s19
      %p248 = scmp.lt.s32.totalorder %s19, 3
      %p249 = pnand %p247, %p248
      %p250 = pneg %p249
      // Predicated region
      $region9: #{tpu_custom_call.1} parent=5 // pred_check
        _
      $region10: #{tpu_custom_call.1} parent=5 // pred_check_branch
        %252 = sbr.rel (%p249) target = $region12
      $region11: #{tpu_custom_call.1} parent=5 // pred_region
        %s253 = ssub.s32 %s19, 1
        // Predicated region
        $region13: #{tpu_custom_call.1} parent=11 // pred_check
          %p254 = pneg %p66
        $region14: #{tpu_custom_call.1} parent=11 // pred_check_branch
          %256 = sbr.rel (%p254) target = $region16
        $region15: #{tpu_custom_call.1} parent=11 // pred_region
          _
        $region16: #{tpu_custom_call.1} parent=11 // pred_fallthru
          _
        // Predicated region
        $region17: #{tpu_custom_call.1} parent=11 // pred_check
          %p257 = pneg %p87
        $region18: #{tpu_custom_call.1} parent=11 // pred_check_branch
          %259 = sbr.rel (%p257) target = $region20
        $region19: #{tpu_custom_call.1} parent=11 // pred_region
          _
        $region20: #{tpu_custom_call.1} parent=11 // pred_fallthru
          _
        // Predicated region
        $region21: #{tpu_custom_call.1} parent=11 // pred_check
          %p260 = pneg %p108
        $region22: #{tpu_custom_call.1} parent=11 // pred_check_branch
          %262 = sbr.rel (%p260) target = $region24
        $region23: #{tpu_custom_call.1} parent=11 // pred_region
          %s264 = ssub.s32 1152, 1152
          %265 = vsyncadd [#allocation3], %s264
          %s266 = sshll.u32 [#allocation2], 4
          %s267 = int_to_ptr.vmem [resolvable:$true] %s266
          %272 = dma.hbm_to_vmem [thread:$0]  %s3, 1152, %s267, [#allocation3], 64, 64, 4
        $region24: #{tpu_custom_call.1} parent=11 // pred_fallthru
          _
        // Predicated region
        $region25: #{tpu_custom_call.1} parent=11 // pred_check
          %p273 = pneg %p129
        $region26: #{tpu_custom_call.1} parent=11 // pred_check_branch
          %275 = sbr.rel (%p273) target = $region28
        $region27: #{tpu_custom_call.1} parent=11 // pred_region
          _
        $region28: #{tpu_custom_call.1} parent=11 // pred_fallthru
          _
        // Predicated region
        $region29: #{tpu_custom_call.1} parent=11 // pred_check
          %p276 = pneg %p150
        $region30: #{tpu_custom_call.1} parent=11 // pred_check_branch
          %278 = sbr.rel (%p276) target = $region32
        $region31: #{tpu_custom_call.1} parent=11 // pred_region
          _
        $region32: #{tpu_custom_call.1} parent=11 // pred_fallthru
          _
        // Predicated region
        $region33: #{tpu_custom_call.1} parent=11 // pred_check
          %p279 = pneg %p171
        $region34: #{tpu_custom_call.1} parent=11 // pred_check_branch
          %281 = sbr.rel (%p279) target = $region36
        $region35: #{tpu_custom_call.1} parent=11 // pred_region
          _
        $region36: #{tpu_custom_call.1} parent=11 // pred_fallthru
          _
        // Predicated region
        $region37: #{tpu_custom_call.1} parent=11 // pred_check
          %p282 = pneg %p192
        $region38: #{tpu_custom_call.1} parent=11 // pred_check_branch
          %284 = sbr.rel (%p282) target = $region40
        $region39: #{tpu_custom_call.1} parent=11 // pred_region
          _
        $region40: #{tpu_custom_call.1} parent=11 // pred_fallthru
          _
        // Predicated region
        $region41: #{tpu_custom_call.1} parent=11 // pred_check
          %p285 = pneg %p213
        $region42: #{tpu_custom_call.1} parent=11 // pred_check_branch
          %287 = sbr.rel (%p285) target = $region44
        $region43: #{tpu_custom_call.1} parent=11 // pred_region
          _
        $region44: #{tpu_custom_call.1} parent=11 // pred_fallthru
          _
      $region12: #{tpu_custom_call.1} parent=5 // pred_fallthru
        _
      %p288 = scmp.lt.s32.totalorder %s19, 2
      // Predicated region
      $region45: #{tpu_custom_call.1} parent=5 // pred_check
        %p289 = pneg %p288
      $region46: #{tpu_custom_call.1} parent=5 // pred_check_branch
        %291 = sbr.rel (%p289) target = $region48
      $region47: #{tpu_custom_call.1} parent=5 // pred_region
        // Predicated region
        $region49: #{tpu_custom_call.1} parent=47 // pred_check
          %p292 = pneg %p39
        $region50: #{tpu_custom_call.1} parent=47 // pred_check_branch
          %294 = sbr.rel (%p292) target = $region52
        $region51: #{tpu_custom_call.1} parent=47 // pred_region
          %p295 = scmp.lt.s32.totalorder %s19, 1
          %s296 = scalar_select %p295, %s19, 1
          %s297 = smul.addr %s296, 2
          %s298 = smul.addr %s297, 4
          %s299 = scalar_lea.vmem %s0, %s298
        $region52: #{tpu_custom_call.1} parent=47 // pred_fallthru
          _
      $region48: #{tpu_custom_call.1} parent=5 // pred_fallthru
        _
      %p300 = scmp.le.s32.totalorder 1, %s19
      %p301 = scmp.lt.s32.totalorder %s19, 3
      %p302 = pnand %p300, %p301
      %p303 = pneg %p302
      // Predicated region
      $region53: #{tpu_custom_call.1} parent=5 // pred_check
        _
      $region54: #{tpu_custom_call.1} parent=5 // pred_check_branch
        %305 = sbr.rel (%p302) target = $region56
      $region55: #{tpu_custom_call.1} parent=5 // pred_region
        %s306 = ssub.s32 %s19, 1
        // Predicated region
        $region57: #{tpu_custom_call.1} parent=55 // pred_check
          %p307 = pneg %p108
        $region58: #{tpu_custom_call.1} parent=55 // pred_check_branch
          %309 = sbr.rel (%p307) target = $region60
        $region59: #{tpu_custom_call.1} parent=55 // pred_region
          %310 = dma.done [#allocation3], 1152
        $region60: #{tpu_custom_call.1} parent=55 // pred_fallthru
          _
        %p311 = scmp.lt.s32.totalorder %s24, 1
        %s312 = scalar_select %p311, %s24, 1
        %s313 = smul.addr %s312, 2
        %s314 = smul.addr %s313, 4
        %s315 = scalar_lea.vmem %s0, %s314
        %p316 = pneg %p45
        %p317 = pneg %p42
        %p318 = pneg %p66
        %p319 = pneg %p63
        %p320 = pneg %p87
        %p321 = pneg %p84
        %p322 = pneg %p108
        %p323 = pneg %p105
        %p324 = pneg %p129
        %p325 = pneg %p126
        %p326 = pneg %p150
        %p327 = pneg %p147
        %p328 = pneg %p171
        %p329 = pneg %p168
        %p330 = pneg %p192
        %p331 = pneg %p189
        %p332 = pneg %p213
        %p333 = pneg %p210
        %p334 = pneg %p239
        %p335 = pneg %p236
        %s336 = sand.u32 %s226, 1
        %s337 = scalar_lea.sflag [#allocation4], %s336
        %s338 = sand.u32 %s226, 1
        %s339 = smul.addr %s338, 16
        %s340 = scalar_lea.vmem [#allocation5], %s339
        %p341 = scmp.lt.s32.totalorder %s24, 1
        %s342 = scalar_select %p341, %s24, 1
        %s343 = smul.addr %s342, 2
        %s344 = smul.addr %s343, 4
        %s345 = scalar_lea.vmem %s0, %s344
        %v347 = vld [vmem:[%s345] sm:$0xff]
        %v348 = vld [vmem:[%s1] sm:$0xf]
        %v349 = vld [vmem:[%s1 + $0x4] sm:$0xf]
        %v350 = vld [vmem:[%s2] sm:$0xff]
        %v351 = vld [vmem:[%s2 + $0x8] sm:$0xff]
        %353 = vset.pattern.permute.xlu0 0
        %354 = vperm.xlu0 %353, %v350
        %v355 = vpop.permute.xlu0 %354
        %358 = vset.pattern.permute.xlu0 0
        %359 = vperm.xlu0 %358, %v351
        %v360 = vpop.permute.xlu0 %359
        %v364 = vunpack.c.l.b16 %v348
        %v365 = vunpack.c.l.b16 %v349
        %v366 = vpack.c.b16 %v365, %v364
        %v368 = vunpack.c.l.b16 %v347
        %v369 = vunpack.c.h.b16 %v347
        %v370 = vpack.c.b16 %v368, %v368
        %v371 = vpack.c.b16 %v369, %v369
        %vm372 = vcmask 64512
        %v374 = vsel %vm372, %v366, 0
        %vm376 = vcmask 1043456
        %v378 = vsel %vm376, %v370, 0
        %v381 = vsel %vm376, %v371, 0
        %383 = vmatprep.subr.bf16.mxu0 0
        %384 = vmatpush1.bf16.msra.mxu0 0
        %385 = vmatprep.subr.bf16.mxu0 0
        %386 = vmatpush1.bf16.msra.mxu0 0
        %387 = vmatprep.subr.bf16.mxu0 0
        %388 = vmatpush1.bf16.msra.mxu0 0
        %389 = vmatprep.subr.bf16.mxu0 0
        %390 = vmatpush1.bf16.msra.mxu0 0
        %391 = vmatprep.subr.bf16.mxu0 0
        %392 = vmatpush1.bf16.msra.mxu0 0
        %393 = vmatprep.subr.bf16.mxu0 0
        %394 = vmatpush1.bf16.msra.mxu0 0
        %395 = vmatprep.subr.bf16.mxu0 0
        %396 = vmatpush1.bf16.msra.mxu0 0
        %397 = vmatprep.subr.bf16.mxu0 %v381
        %398 = vmatpush1.bf16.msra.mxu0 %v378
        %399 = vmatprep.subr.bf16.mxu0 0
        %400 = vmatpush2.bf16.msra.mxu0 0
        %401 = vmatprep.subr.bf16.mxu0 0
        %402 = vmatpush2.bf16.msra.mxu0 0
        %403 = vmatprep.subr.bf16.mxu0 0
        %404 = vmatpush2.bf16.msra.mxu0 0
        %405 = vmatprep.subr.bf16.mxu0 0
        %406 = vmatpush2.bf16.msra.mxu0 0
        %407 = vmatprep.subr.bf16.mxu0 0
        %408 = vmatpush2.bf16.msra.mxu0 0
        %409 = vmatprep.subr.bf16.mxu0 0
        %410 = vmatpush2.bf16.msra.mxu0 0
        %411 = vmatprep.subr.bf16.mxu0 0
        %412 = vmatpush2.bf16.msra.mxu0 0
        %413 = vmatprep.subr.bf16.mxu0 0
        %414 = vmatpush2.bf16.msra.mxu0 0
        %415 = vmatprep.mubr.bf16.mxu0 0
        %416 = vmatmul.mubr.bf16.gmra.mxu0 %v374
        %v417 = vpop.f32.mrf.mxu0
        %v418 = vadd.f32 %v355, %v417
        %v419 = vpop.f32.mrf.mxu0
        %v420 = vadd.f32 %v355, %v419
        %v421 = vpop.f32.mrf.mxu0
        %v422 = vadd.f32 %v360, %v421
        %v423 = vpop.f32.mrf.mxu0
        %v424 = vadd.f32 %v360, %v423
        %425 = vdwg.mxu0
        %v426 = vpack.c.bf16 %v422, %v418
        %v427 = vpack.c.bf16 %v424, %v420
        %430 = vrot.lane.b32.xlu0 %v426, 16
        %v431 = vpop.permute.xlu0 %430
        %432 = vrot.lane.b32.xlu0 %v427, 16
        %v433 = vpop.permute.xlu0 %432
        %vm434 = vcmask 130048
        %v435 = vsel %vm434, %v431, %v433
        %vm437 = vcmask 130048
        %v440 = vsel %vm437, 0, %v431
        %442 = vrot.lane.b32.xlu0 %v426, 112
        %v443 = vpop.permute.xlu0 %442
        %444 = vrot.lane.b32.xlu0 %v427, 112
        %v445 = vpop.permute.xlu0 %444
        %vm446 = vcmask 916480
        %v447 = vsel %vm446, %v443, %v445
        %vm449 = vcmask 916480
        %v451 = vsel %vm449, %v445, 0
        %v453 = vld [vmem:[#allocation2] sm:$0xf]
        %v454 = vld [vmem:[#allocation2 + $0x4] sm:$0xf]
        %s455 = scalar_lea.vmem [#allocation2], 24
        %v456 = vld [vmem:[%s455] sm:$0xf]
        %v457 = vld [vmem:[%s455 + $0x4] sm:$0xf]
        %v460 = vunpack.c.l.b16 %v456
        %v461 = vunpack.c.l.b16 %v457
        %v462 = vpack.c.b16 %v461, %v460
        %v464 = vsel %vm437, %v462, 0
        %466 = vmatprep.subr.bf16.mxu0 0
        %467 = vmatpush1.bf16.msra.mxu0 0
        %468 = vmatprep.subr.bf16.mxu0 0
        %469 = vmatpush1.bf16.msra.mxu0 0
        %470 = vmatprep.subr.bf16.mxu0 0
        %471 = vmatpush1.bf16.msra.mxu0 0
        %472 = vmatprep.subr.bf16.mxu0 0
        %473 = vmatpush1.bf16.msra.mxu0 0
        %474 = vmatprep.subr.bf16.mxu0 0
        %475 = vmatpush1.bf16.msra.mxu0 0
        %476 = vmatprep.subr.bf16.mxu0 0
        %477 = vmatpush1.bf16.msra.mxu0 0
        %478 = vmatprep.subr.bf16.mxu0 0
        %479 = vmatpush1.bf16.msra.mxu0 0
        %480 = vmatprep.subr.bf16.mxu0 %v427
        %481 = vmatpush1.bf16.msra.mxu0 %v426
        %482 = vmatprep.subr.bf16.mxu0 0
        %483 = vmatpush2.bf16.msra.mxu0 0
        %484 = vmatprep.subr.bf16.mxu0 0
        %485 = vmatpush2.bf16.msra.mxu0 0
        %486 = vmatprep.subr.bf16.mxu0 0
        %487 = vmatpush2.bf16.msra.mxu0 0
        %488 = vmatprep.subr.bf16.mxu0 0
        %489 = vmatpush2.bf16.msra.mxu0 0
        %490 = vmatprep.subr.bf16.mxu0 0
        %491 = vmatpush2.bf16.msra.mxu0 0
        %492 = vmatprep.subr.bf16.mxu0 0
        %493 = vmatpush2.bf16.msra.mxu0 0
        %494 = vmatprep.subr.bf16.mxu0 0
        %495 = vmatpush2.bf16.msra.mxu0 0
        %496 = vmatprep.subr.bf16.mxu0 0
        %497 = vmatpush2.bf16.msra.mxu0 0
        %498 = vmatprep.mubr.bf16.mxu0 0
        %499 = vmatmul.mubr.bf16.gmra.mxu0 %v464
        %v500 = vpop.f32.mrf.mxu0
        %v501 = vadd.f32 0.0, %v500
        %v502 = vpop.f32.mrf.mxu0
        %v503 = vadd.f32 0.0, %v502
        %v504 = vpop.f32.mrf.mxu0
        %v505 = vadd.f32 0.0, %v504
        %v506 = vpop.f32.mrf.mxu0
        %v507 = vadd.f32 0.0, %v506
        %508 = vdwg.mxu0
        %v511 = vunpack.c.l.b16 %v453
        %v512 = vunpack.c.l.b16 %v454
        %v513 = vpack.c.b16 %v512, %v511
        %v515 = vsel %vm437, %v513, 0
        %517 = vmatprep.subr.bf16.mxu0 0
        %518 = vmatpush1.bf16.msra.mxu0 0
        %519 = vmatprep.subr.bf16.mxu0 0
        %520 = vmatpush1.bf16.msra.mxu0 0
        %521 = vmatprep.subr.bf16.mxu0 0
        %522 = vmatpush1.bf16.msra.mxu0 0
        %523 = vmatprep.subr.bf16.mxu0 0
        %524 = vmatpush1.bf16.msra.mxu0 0
        %525 = vmatprep.subr.bf16.mxu0 0
        %526 = vmatpush1.bf16.msra.mxu0 0
        %527 = vmatprep.subr.bf16.mxu0 0
        %528 = vmatpush1.bf16.msra.mxu0 0
        %529 = vmatprep.subr.bf16.mxu0 0
        %530 = vmatpush1.bf16.msra.mxu0 0
        %531 = vmatprep.subr.bf16.mxu0 %v435
        %532 = vmatpush1.bf16.msra.mxu0 %v440
        %533 = vmatprep.subr.bf16.mxu0 0
        %534 = vmatpush2.bf16.msra.mxu0 0
        %535 = vmatprep.subr.bf16.mxu0 0
        %536 = vmatpush2.bf16.msra.mxu0 0
        %537 = vmatprep.subr.bf16.mxu0 0
        %538 = vmatpush2.bf16.msra.mxu0 0
        %539 = vmatprep.subr.bf16.mxu0 0
        %540 = vmatpush2.bf16.msra.mxu0 0
        %541 = vmatprep.subr.bf16.mxu0 0
        %542 = vmatpush2.bf16.msra.mxu0 0
        %543 = vmatprep.subr.bf16.mxu0 0
        %544 = vmatpush2.bf16.msra.mxu0 0
        %545 = vmatprep.subr.bf16.mxu0 0
        %546 = vmatpush2.bf16.msra.mxu0 0
        %547 = vmatprep.subr.bf16.mxu0 0
        %548 = vmatpush2.bf16.msra.mxu0 0
        %549 = vmatprep.mubr.bf16.mxu0 0
        %550 = vmatmul.mubr.bf16.gmra.mxu0 %v515
        %v551 = vpop.f32.mrf.mxu0
        %v552 = vadd.f32 %v501, %v551
        %v553 = vpop.f32.mrf.mxu0
        %v554 = vadd.f32 %v503, %v553
        %v555 = vpop.f32.mrf.mxu0
        %v556 = vadd.f32 %v505, %v555
        %v557 = vpop.f32.mrf.mxu0
        %v558 = vadd.f32 %v507, %v557
        %559 = vdwg.mxu0
        %s560 = scalar_lea.vmem [#allocation2], 48
        %v561 = vld [vmem:[%s560] sm:$0xf]
        %v562 = vld [vmem:[%s560 + $0x4] sm:$0xf]
        %v565 = vunpack.c.l.b16 %v561
        %v566 = vunpack.c.l.b16 %v562
        %v567 = vpack.c.b16 %v566, %v565
        %v569 = vsel %vm437, %v567, 0
        %571 = vmatprep.subr.bf16.mxu0 0
        %572 = vmatpush1.bf16.msra.mxu0 0
        %573 = vmatprep.subr.bf16.mxu0 0
        %574 = vmatpush1.bf16.msra.mxu0 0
        %575 = vmatprep.subr.bf16.mxu0 0
        %576 = vmatpush1.bf16.msra.mxu0 0
        %577 = vmatprep.subr.bf16.mxu0 0
        %578 = vmatpush1.bf16.msra.mxu0 0
        %579 = vmatprep.subr.bf16.mxu0 0
        %580 = vmatpush1.bf16.msra.mxu0 0
        %581 = vmatprep.subr.bf16.mxu0 0
        %582 = vmatpush1.bf16.msra.mxu0 0
        %583 = vmatprep.subr.bf16.mxu0 0
        %584 = vmatpush1.bf16.msra.mxu0 0
        %585 = vmatprep.subr.bf16.mxu0 %v451
        %586 = vmatpush1.bf16.msra.mxu0 %v447
        %587 = vmatprep.subr.bf16.mxu0 0
        %588 = vmatpush2.bf16.msra.mxu0 0
        %589 = vmatprep.subr.bf16.mxu0 0
        %590 = vmatpush2.bf16.msra.mxu0 0
        %591 = vmatprep.subr.bf16.mxu0 0
        %592 = vmatpush2.bf16.msra.mxu0 0
        %593 = vmatprep.subr.bf16.mxu0 0
        %594 = vmatpush2.bf16.msra.mxu0 0
        %595 = vmatprep.subr.bf16.mxu0 0
        %596 = vmatpush2.bf16.msra.mxu0 0
        %597 = vmatprep.subr.bf16.mxu0 0
        %598 = vmatpush2.bf16.msra.mxu0 0
        %599 = vmatprep.subr.bf16.mxu0 0
        %600 = vmatpush2.bf16.msra.mxu0 0
        %601 = vmatprep.subr.bf16.mxu0 0
        %602 = vmatpush2.bf16.msra.mxu0 0
        %603 = vmatprep.mubr.bf16.mxu0 0
        %604 = vmatmul.mubr.bf16.gmra.mxu0 %v569
        %v605 = vpop.f32.mrf.mxu0
        %v606 = vadd.f32 0.0, %v605
        %v607 = vpop.f32.mrf.mxu0
        %v608 = vadd.f32 0.0, %v607
        %v609 = vpop.f32.mrf.mxu0
        %v610 = vadd.f32 0.0, %v609
        %v611 = vpop.f32.mrf.mxu0
        %v612 = vadd.f32 0.0, %v611
        %613 = vdwg.mxu0
        %v614 = vadd.f32 %v552, %v606
        %v615 = vadd.f32 %v554, %v608
        %v616 = vadd.f32 %v556, %v610
        %v617 = vadd.f32 %v558, %v612
        %s618 = scalar_lea.vmem [#allocation2], 8
        %v619 = vld [vmem:[%s618] sm:$0xf]
        %v620 = vld [vmem:[%s618 + $0x4] sm:$0xf]
        %s621 = scalar_lea.vmem [#allocation2], 32
        %v622 = vld [vmem:[%s621] sm:$0xf]
        %v623 = vld [vmem:[%s621 + $0x4] sm:$0xf]
        %v626 = vunpack.c.l.b16 %v622
        %v627 = vunpack.c.l.b16 %v623
        %v628 = vpack.c.b16 %v627, %v626
        %v630 = vsel %vm437, %v628, 0
        %632 = vmatprep.subr.bf16.mxu0 0
        %633 = vmatpush1.bf16.msra.mxu0 0
        %634 = vmatprep.subr.bf16.mxu0 0
        %635 = vmatpush1.bf16.msra.mxu0 0
        %636 = vmatprep.subr.bf16.mxu0 0
        %637 = vmatpush1.bf16.msra.mxu0 0
        %638 = vmatprep.subr.bf16.mxu0 0
        %639 = vmatpush1.bf16.msra.mxu0 0
        %640 = vmatprep.subr.bf16.mxu0 0
        %641 = vmatpush1.bf16.msra.mxu0 0
        %642 = vmatprep.subr.bf16.mxu0 0
        %643 = vmatpush1.bf16.msra.mxu0 0
        %644 = vmatprep.subr.bf16.mxu0 0
        %645 = vmatpush1.bf16.msra.mxu0 0
        %646 = vmatprep.subr.bf16.mxu0 %v427
        %647 = vmatpush1.bf16.msra.mxu0 %v426
        %648 = vmatprep.subr.bf16.mxu0 0
        %649 = vmatpush2.bf16.msra.mxu0 0
        %650 = vmatprep.subr.bf16.mxu0 0
        %651 = vmatpush2.bf16.msra.mxu0 0
        %652 = vmatprep.subr.bf16.mxu0 0
        %653 = vmatpush2.bf16.msra.mxu0 0
        %654 = vmatprep.subr.bf16.mxu0 0
        %655 = vmatpush2.bf16.msra.mxu0 0
        %656 = vmatprep.subr.bf16.mxu0 0
        %657 = vmatpush2.bf16.msra.mxu0 0
        %658 = vmatprep.subr.bf16.mxu0 0
        %659 = vmatpush2.bf16.msra.mxu0 0
        %660 = vmatprep.subr.bf16.mxu0 0
        %661 = vmatpush2.bf16.msra.mxu0 0
        %662 = vmatprep.subr.bf16.mxu0 0
        %663 = vmatpush2.bf16.msra.mxu0 0
        %664 = vmatprep.mubr.bf16.mxu0 0
        %665 = vmatmul.mubr.bf16.gmra.mxu0 %v630
        %v666 = vpop.f32.mrf.mxu0
        %v667 = vadd.f32 0.0, %v666
        %v668 = vpop.f32.mrf.mxu0
        %v669 = vadd.f32 0.0, %v668
        %v670 = vpop.f32.mrf.mxu0
        %v671 = vadd.f32 0.0, %v670
        %v672 = vpop.f32.mrf.mxu0
        %v673 = vadd.f32 0.0, %v672
        %674 = vdwg.mxu0
        %v677 = vunpack.c.l.b16 %v619
        %v678 = vunpack.c.l.b16 %v620
        %v679 = vpack.c.b16 %v678, %v677
        %v681 = vsel %vm437, %v679, 0
        %683 = vmatprep.subr.bf16.mxu0 0
        %684 = vmatpush1.bf16.msra.mxu0 0
        %685 = vmatprep.subr.bf16.mxu0 0
        %686 = vmatpush1.bf16.msra.mxu0 0
        %687 = vmatprep.subr.bf16.mxu0 0
        %688 = vmatpush1.bf16.msra.mxu0 0
        %689 = vmatprep.subr.bf16.mxu0 0
        %690 = vmatpush1.bf16.msra.mxu0 0
        %691 = vmatprep.subr.bf16.mxu0 0
        %692 = vmatpush1.bf16.msra.mxu0 0
        %693 = vmatprep.subr.bf16.mxu0 0
        %694 = vmatpush1.bf16.msra.mxu0 0
        %695 = vmatprep.subr.bf16.mxu0 0
        %696 = vmatpush1.bf16.msra.mxu0 0
        %697 = vmatprep.subr.bf16.mxu0 %v435
        %698 = vmatpush1.bf16.msra.mxu0 %v440
        %699 = vmatprep.subr.bf16.mxu0 0
        %700 = vmatpush2.bf16.msra.mxu0 0
        %701 = vmatprep.subr.bf16.mxu0 0
        %702 = vmatpush2.bf16.msra.mxu0 0
        %703 = vmatprep.subr.bf16.mxu0 0
        %704 = vmatpush2.bf16.msra.mxu0 0
        %705 = vmatprep.subr.bf16.mxu0 0
        %706 = vmatpush2.bf16.msra.mxu0 0
        %707 = vmatprep.subr.bf16.mxu0 0
        %708 = vmatpush2.bf16.msra.mxu0 0
        %709 = vmatprep.subr.bf16.mxu0 0
        %710 = vmatpush2.bf16.msra.mxu0 0
        %711 = vmatprep.subr.bf16.mxu0 0
        %712 = vmatpush2.bf16.msra.mxu0 0
        %713 = vmatprep.subr.bf16.mxu0 0
        %714 = vmatpush2.bf16.msra.mxu0 0
        %715 = vmatprep.mubr.bf16.mxu0 0
        %716 = vmatmul.mubr.bf16.gmra.mxu0 %v681
        %v717 = vpop.f32.mrf.mxu0
        %v718 = vadd.f32 %v667, %v717
        %v719 = vpop.f32.mrf.mxu0
        %v720 = vadd.f32 %v669, %v719
        %v721 = vpop.f32.mrf.mxu0
        %v722 = vadd.f32 %v671, %v721
        %v723 = vpop.f32.mrf.mxu0
        %v724 = vadd.f32 %v673, %v723
        %725 = vdwg.mxu0
        %s726 = scalar_lea.vmem [#allocation2], 56
        %v727 = vld [vmem:[%s726] sm:$0xf]
        %v728 = vld [vmem:[%s726 + $0x4] sm:$0xf]
        %v731 = vunpack.c.l.b16 %v727
        %v732 = vunpack.c.l.b16 %v728
        %v733 = vpack.c.b16 %v732, %v731
        %v735 = vsel %vm437, %v733, 0
        %737 = vmatprep.subr.bf16.mxu0 0
        %738 = vmatpush1.bf16.msra.mxu0 0
        %739 = vmatprep.subr.bf16.mxu0 0
        %740 = vmatpush1.bf16.msra.mxu0 0
        %741 = vmatprep.subr.bf16.mxu0 0
        %742 = vmatpush1.bf16.msra.mxu0 0
        %743 = vmatprep.subr.bf16.mxu0 0
        %744 = vmatpush1.bf16.msra.mxu0 0
        %745 = vmatprep.subr.bf16.mxu0 0
        %746 = vmatpush1.bf16.msra.mxu0 0
        %747 = vmatprep.subr.bf16.mxu0 0
        %748 = vmatpush1.bf16.msra.mxu0 0
        %749 = vmatprep.subr.bf16.mxu0 0
        %750 = vmatpush1.bf16.msra.mxu0 0
        %751 = vmatprep.subr.bf16.mxu0 %v451
        %752 = vmatpush1.bf16.msra.mxu0 %v447
        %753 = vmatprep.subr.bf16.mxu0 0
        %754 = vmatpush2.bf16.msra.mxu0 0
        %755 = vmatprep.subr.bf16.mxu0 0
        %756 = vmatpush2.bf16.msra.mxu0 0
        %757 = vmatprep.subr.bf16.mxu0 0
        %758 = vmatpush2.bf16.msra.mxu0 0
        %759 = vmatprep.subr.bf16.mxu0 0
        %760 = vmatpush2.bf16.msra.mxu0 0
        %761 = vmatprep.subr.bf16.mxu0 0
        %762 = vmatpush2.bf16.msra.mxu0 0
        %763 = vmatprep.subr.bf16.mxu0 0
        %764 = vmatpush2.bf16.msra.mxu0 0
        %765 = vmatprep.subr.bf16.mxu0 0
        %766 = vmatpush2.bf16.msra.mxu0 0
        %767 = vmatprep.subr.bf16.mxu0 0
        %768 = vmatpush2.bf16.msra.mxu0 0
        %769 = vmatprep.mubr.bf16.mxu0 0
        %770 = vmatmul.mubr.bf16.gmra.mxu0 %v735
        %v771 = vpop.f32.mrf.mxu0
        %v772 = vadd.f32 0.0, %v771
        %v773 = vpop.f32.mrf.mxu0
        %v774 = vadd.f32 0.0, %v773
        %v775 = vpop.f32.mrf.mxu0
        %v776 = vadd.f32 0.0, %v775
        %v777 = vpop.f32.mrf.mxu0
        %v778 = vadd.f32 0.0, %v777
        %779 = vdwg.mxu0
        %v780 = vadd.f32 %v718, %v772
        %v781 = vadd.f32 %v720, %v774
        %v782 = vadd.f32 %v722, %v776
        %v783 = vadd.f32 %v724, %v778
        %s784 = scalar_lea.vmem [#allocation2], 16
        %v785 = vld [vmem:[%s784] sm:$0xf]
        %v786 = vld [vmem:[%s784 + $0x4] sm:$0xf]
        %s787 = scalar_lea.vmem [#allocation2], 40
        %v788 = vld [vmem:[%s787] sm:$0xf]
        %v789 = vld [vmem:[%s787 + $0x4] sm:$0xf]
        %v792 = vunpack.c.l.b16 %v788
        %v793 = vunpack.c.l.b16 %v789
        %v794 = vpack.c.b16 %v793, %v792
        %v796 = vsel %vm437, %v794, 0
        %798 = vmatprep.subr.bf16.mxu0 0
        %799 = vmatpush1.bf16.msra.mxu0 0
        %800 = vmatprep.subr.bf16.mxu0 0
        %801 = vmatpush1.bf16.msra.mxu0 0
        %802 = vmatprep.subr.bf16.mxu0 0
        %803 = vmatpush1.bf16.msra.mxu0 0
        %804 = vmatprep.subr.bf16.mxu0 0
        %805 = vmatpush1.bf16.msra.mxu0 0
        %806 = vmatprep.subr.bf16.mxu0 0
        %807 = vmatpush1.bf16.msra.mxu0 0
        %808 = vmatprep.subr.bf16.mxu0 0
        %809 = vmatpush1.bf16.msra.mxu0 0
        %810 = vmatprep.subr.bf16.mxu0 0
        %811 = vmatpush1.bf16.msra.mxu0 0
        %812 = vmatprep.subr.bf16.mxu0 %v427
        %813 = vmatpush1.bf16.msra.mxu0 %v426
        %814 = vmatprep.subr.bf16.mxu0 0
        %815 = vmatpush2.bf16.msra.mxu0 0
        %816 = vmatprep.subr.bf16.mxu0 0
        %817 = vmatpush2.bf16.msra.mxu0 0
        %818 = vmatprep.subr.bf16.mxu0 0
        %819 = vmatpush2.bf16.msra.mxu0 0
        %820 = vmatprep.subr.bf16.mxu0 0
        %821 = vmatpush2.bf16.msra.mxu0 0
        %822 = vmatprep.subr.bf16.mxu0 0
        %823 = vmatpush2.bf16.msra.mxu0 0
        %824 = vmatprep.subr.bf16.mxu0 0
        %825 = vmatpush2.bf16.msra.mxu0 0
        %826 = vmatprep.subr.bf16.mxu0 0
        %827 = vmatpush2.bf16.msra.mxu0 0
        %828 = vmatprep.subr.bf16.mxu0 0
        %829 = vmatpush2.bf16.msra.mxu0 0
        %830 = vmatprep.mubr.bf16.mxu0 0
        %831 = vmatmul.mubr.bf16.gmra.mxu0 %v796
        %v832 = vpop.f32.mrf.mxu0
        %v833 = vadd.f32 0.0, %v832
        %v834 = vpop.f32.mrf.mxu0
        %v835 = vadd.f32 0.0, %v834
        %v836 = vpop.f32.mrf.mxu0
        %v837 = vadd.f32 0.0, %v836
        %v838 = vpop.f32.mrf.mxu0
        %v839 = vadd.f32 0.0, %v838
        %840 = vdwg.mxu0
        %v843 = vunpack.c.l.b16 %v785
        %v844 = vunpack.c.l.b16 %v786
        %v845 = vpack.c.b16 %v844, %v843
        %v847 = vsel %vm437, %v845, 0
        %849 = vmatprep.subr.bf16.mxu0 0
        %850 = vmatpush1.bf16.msra.mxu0 0
        %851 = vmatprep.subr.bf16.mxu0 0
        %852 = vmatpush1.bf16.msra.mxu0 0
        %853 = vmatprep.subr.bf16.mxu0 0
        %854 = vmatpush1.bf16.msra.mxu0 0
        %855 = vmatprep.subr.bf16.mxu0 0
        %856 = vmatpush1.bf16.msra.mxu0 0
        %857 = vmatprep.subr.bf16.mxu0 0
        %858 = vmatpush1.bf16.msra.mxu0 0
        %859 = vmatprep.subr.bf16.mxu0 0
        %860 = vmatpush1.bf16.msra.mxu0 0
        %861 = vmatprep.subr.bf16.mxu0 0
        %862 = vmatpush1.bf16.msra.mxu0 0
        %863 = vmatprep.subr.bf16.mxu0 %v435
        %864 = vmatpush1.bf16.msra.mxu0 %v440
        %865 = vmatprep.subr.bf16.mxu0 0
        %866 = vmatpush2.bf16.msra.mxu0 0
        %867 = vmatprep.subr.bf16.mxu0 0
        %868 = vmatpush2.bf16.msra.mxu0 0
        %869 = vmatprep.subr.bf16.mxu0 0
        %870 = vmatpush2.bf16.msra.mxu0 0
        %871 = vmatprep.subr.bf16.mxu0 0
        %872 = vmatpush2.bf16.msra.mxu0 0
        %873 = vmatprep.subr.bf16.mxu0 0
        %874 = vmatpush2.bf16.msra.mxu0 0
        %875 = vmatprep.subr.bf16.mxu0 0
        %876 = vmatpush2.bf16.msra.mxu0 0
        %877 = vmatprep.subr.bf16.mxu0 0
        %878 = vmatpush2.bf16.msra.mxu0 0
        %879 = vmatprep.subr.bf16.mxu0 0
        %880 = vmatpush2.bf16.msra.mxu0 0
        %881 = vmatprep.mubr.bf16.mxu0 0
        %882 = vmatmul.mubr.bf16.gmra.mxu0 %v847
        %v883 = vpop.f32.mrf.mxu0
        %v884 = vadd.f32 %v833, %v883
        %v885 = vpop.f32.mrf.mxu0
        %v886 = vadd.f32 %v835, %v885
        %v887 = vpop.f32.mrf.mxu0
        %v888 = vadd.f32 %v837, %v887
        %v889 = vpop.f32.mrf.mxu0
        %v890 = vadd.f32 %v839, %v889
        %891 = vdwg.mxu0
        %s892 = scalar_lea.vmem [#allocation2], 64
        %v893 = vld [vmem:[%s892] sm:$0xf]
        %v894 = vld [vmem:[%s892 + $0x4] sm:$0xf]
        %v897 = vunpack.c.l.b16 %v893
        %v898 = vunpack.c.l.b16 %v894
        %v899 = vpack.c.b16 %v898, %v897
        %v901 = vsel %vm437, %v899, 0
        %903 = vmatprep.subr.bf16.mxu0 0
        %904 = vmatpush1.bf16.msra.mxu0 0
        %905 = vmatprep.subr.bf16.mxu0 0
        %906 = vmatpush1.bf16.msra.mxu0 0
        %907 = vmatprep.subr.bf16.mxu0 0
        %908 = vmatpush1.bf16.msra.mxu0 0
        %909 = vmatprep.subr.bf16.mxu0 0
        %910 = vmatpush1.bf16.msra.mxu0 0
        %911 = vmatprep.subr.bf16.mxu0 0
        %912 = vmatpush1.bf16.msra.mxu0 0
        %913 = vmatprep.subr.bf16.mxu0 0
        %914 = vmatpush1.bf16.msra.mxu0 0
        %915 = vmatprep.subr.bf16.mxu0 0
        %916 = vmatpush1.bf16.msra.mxu0 0
        %917 = vmatprep.subr.bf16.mxu0 %v451
        %918 = vmatpush1.bf16.msra.mxu0 %v447
        %919 = vmatprep.subr.bf16.mxu0 0
        %920 = vmatpush2.bf16.msra.mxu0 0
        %921 = vmatprep.subr.bf16.mxu0 0
        %922 = vmatpush2.bf16.msra.mxu0 0
        %923 = vmatprep.subr.bf16.mxu0 0
        %924 = vmatpush2.bf16.msra.mxu0 0
        %925 = vmatprep.subr.bf16.mxu0 0
        %926 = vmatpush2.bf16.msra.mxu0 0
        %927 = vmatprep.subr.bf16.mxu0 0
        %928 = vmatpush2.bf16.msra.mxu0 0
        %929 = vmatprep.subr.bf16.mxu0 0
        %930 = vmatpush2.bf16.msra.mxu0 0
        %931 = vmatprep.subr.bf16.mxu0 0
        %932 = vmatpush2.bf16.msra.mxu0 0
        %933 = vmatprep.subr.bf16.mxu0 0
        %934 = vmatpush2.bf16.msra.mxu0 0
        %935 = vmatprep.mubr.bf16.mxu0 0
        %936 = vmatmul.mubr.bf16.gmra.mxu0 %v901
        %v937 = vpop.f32.mrf.mxu0
        %v938 = vadd.f32 0.0, %v937
        %v939 = vpop.f32.mrf.mxu0
        %v940 = vadd.f32 0.0, %v939
        %v941 = vpop.f32.mrf.mxu0
        %v942 = vadd.f32 0.0, %v941
        %v943 = vpop.f32.mrf.mxu0
        %v944 = vadd.f32 0.0, %v943
        %945 = vdwg.mxu0
        %v946 = vadd.f32 %v884, %v938
        %v947 = vadd.f32 %v886, %v940
        %v948 = vadd.f32 %v888, %v942
        %v949 = vadd.f32 %v890, %v944
        %954 = vrot.lane.b32.xlu0 %v614, 1
        %v955 = vpop.permute.xlu0 %954
        %956 = vrot.lane.b32.xlu0 %v615, 1
        %v957 = vpop.permute.xlu0 %956
        %958 = vrot.lane.b32.xlu0 %v616, 1
        %v959 = vpop.permute.xlu0 %958
        %960 = vrot.lane.b32.xlu0 %v617, 1
        %v961 = vpop.permute.xlu0 %960
        %vm962 = vcmask 7168
        %v963 = vsel %vm962, %v955, %v957
        %v964 = vsel %vm962, %v959, %v961
        %v969 = vsel %vm962, 0.0, %v955
        %v970 = vsel %vm962, 0.0, %v959
        %v971 = vld [vmem:[%s7] sm:$0x3]
        %v973 = vlaneseq
        %v974 = vshrl.u32 %v973, 7
        %v975 = vsub.s32 0, %v974
        %v976 = vrot.slane %v971, %v975
        %v977 = vlaneseq
        %v978 = vshrl.u32 %v977, 7
        %v979 = vsub.s32 1, %v978
        %v980 = vrot.slane %v971, %v979
        %v983 = vmul.f32 %v969, %v976
        %v984 = vmul.f32 %v963, %v980
        %v985 = vmul.f32 %v970, %v976
        %v986 = vmul.f32 %v964, %v980
        %v987 = vadd.f32 %v983, %v780
        %v988 = vadd.f32 %v984, %v781
        %v989 = vadd.f32 %v985, %v782
        %v990 = vadd.f32 %v986, %v783
        %995 = vrot.lane.b32.xlu0 %v946, 127
        %v996 = vpop.permute.xlu0 %995
        %997 = vrot.lane.b32.xlu0 %v947, 127
        %v998 = vpop.permute.xlu0 %997
        %999 = vrot.lane.b32.xlu0 %v948, 127
        %v1000 = vpop.permute.xlu0 %999
        %1001 = vrot.lane.b32.xlu0 %v949, 127
        %v1002 = vpop.permute.xlu0 %1001
        %vm1003 = vcmask 1039360
        %v1004 = vsel %vm1003, %v996, %v998
        %v1005 = vsel %vm1003, %v1000, %v1002
        %v1010 = vsel %vm1003, %v998, 0.0
        %v1011 = vsel %vm1003, %v1002, 0.0
        %v1012 = vld [vmem:[%s8] sm:$0x3]
        %v1014 = vlaneseq
        %v1015 = vshrl.u32 %v1014, 7
        %v1016 = vsub.s32 0, %v1015
        %v1017 = vrot.slane %v1012, %v1016
        %v1018 = vlaneseq
        %v1019 = vshrl.u32 %v1018, 7
        %v1020 = vsub.s32 1, %v1019
        %v1021 = vrot.slane %v1012, %v1020
        %v1024 = vmul.f32 %v1004, %v1017
        %v1025 = vmul.f32 %v1010, %v1021
        %v1026 = vmul.f32 %v1005, %v1017
        %v1027 = vmul.f32 %v1011, %v1021
        %v1028 = vadd.f32 %v987, %v1024
        %v1029 = vadd.f32 %v988, %v1025
        %v1030 = vadd.f32 %v989, %v1026
        %v1031 = vadd.f32 %v990, %v1027
        %v1032 = vld [vmem:[%s4] sm:$0xff]
        %v1033 = vld [vmem:[%s4 + $0x8] sm:$0xff]
        %1035 = vset.pattern.permute.xlu0 0
        %1036 = vperm.xlu0 %1035, %v1032
        %v1037 = vpop.permute.xlu0 %1036
        %1040 = vset.pattern.permute.xlu0 0
        %1041 = vperm.xlu0 %1040, %v1033
        %v1042 = vpop.permute.xlu0 %1041
        %v1044 = vadd.f32 %v1028, %v1037
        %v1045 = vadd.f32 %v1029, %v1037
        %v1046 = vadd.f32 %v1030, %v1042
        %v1047 = vadd.f32 %v1031, %v1042
        %v1048 = vmul.f32 %v1044, 0.5
        %v1049 = vmul.f32 %v1045, 0.5
        %v1050 = vmul.f32 %v1046, 0.5
        %v1051 = vmul.f32 %v1047, 0.5
        %v1052 = vmul.f32 %v1044, 0.70710677
        %v1053 = vmul.f32 %v1045, 0.70710677
        %v1054 = vmul.f32 %v1046, 0.70710677
        %v1055 = vmul.f32 %v1047, 0.70710677
        %v1056 = verf.f32.pop %v1052
        %v1057 = verf.f32.pop %v1053
        %v1058 = verf.f32.pop %v1054
        %v1059 = verf.f32.pop %v1055
        %v1060 = vadd.f32 %v1056, 1.0
        %v1061 = vadd.f32 %v1057, 1.0
        %v1062 = vadd.f32 %v1058, 1.0
        %v1063 = vadd.f32 %v1059, 1.0
        %v1064 = vmul.f32 %v1048, %v1060
        %v1065 = vmul.f32 %v1049, %v1061
        %v1066 = vmul.f32 %v1050, %v1062
        %v1067 = vmul.f32 %v1051, %v1063
        %v1068 = vld [vmem:[%s5] sm:$0xf]
        %v1069 = vpack.c.bf16 %v1066, %v1064
        %v1070 = vpack.c.bf16 %v1067, %v1065
        %v1071 = vld [vmem:[%s6] sm:$0xff]
        %1073 = vset.pattern.permute.xlu0 0
        %1074 = vperm.xlu0 %1073, %v1071
        %v1075 = vpop.permute.xlu0 %1074
        %v1078 = vsel %vm437, %v1068, 0
        %1080 = vmatprep.subr.bf16.mxu0 0
        %1081 = vmatpush1.bf16.msra.mxu0 0
        %1082 = vmatprep.subr.bf16.mxu0 0
        %1083 = vmatpush1.bf16.msra.mxu0 0
        %1084 = vmatprep.subr.bf16.mxu0 0
        %1085 = vmatpush1.bf16.msra.mxu0 0
        %1086 = vmatprep.subr.bf16.mxu0 0
        %1087 = vmatpush1.bf16.msra.mxu0 0
        %1088 = vmatprep.subr.bf16.mxu0 0
        %1089 = vmatpush1.bf16.msra.mxu0 0
        %1090 = vmatprep.subr.bf16.mxu0 0
        %1091 = vmatpush1.bf16.msra.mxu0 0
        %1092 = vmatprep.subr.bf16.mxu0 0
        %1093 = vmatpush1.bf16.msra.mxu0 0
        %1094 = vmatprep.subr.bf16.mxu0 %v1070
        %1095 = vmatpush1.bf16.msra.mxu0 %v1069
        %1096 = vmatprep.subr.bf16.mxu0 0
        %1097 = vmatpush2.bf16.msra.mxu0 0
        %1098 = vmatprep.subr.bf16.mxu0 0
        %1099 = vmatpush2.bf16.msra.mxu0 0
        %1100 = vmatprep.subr.bf16.mxu0 0
        %1101 = vmatpush2.bf16.msra.mxu0 0
        %1102 = vmatprep.subr.bf16.mxu0 0
        %1103 = vmatpush2.bf16.msra.mxu0 0
        %1104 = vmatprep.subr.bf16.mxu0 0
        %1105 = vmatpush2.bf16.msra.mxu0 0
        %1106 = vmatprep.subr.bf16.mxu0 0
        %1107 = vmatpush2.bf16.msra.mxu0 0
        %1108 = vmatprep.subr.bf16.mxu0 0
        %1109 = vmatpush2.bf16.msra.mxu0 0
        %1110 = vmatprep.subr.bf16.mxu0 0
        %1111 = vmatpush2.bf16.msra.mxu0 0
        %1112 = vmatprep.mubr.bf16.mxu0 0
        %1113 = vmatmul.mubr.bf16.gmra.mxu0 %v1078
        %v1114 = vpop.f32.mrf.mxu0
        %v1115 = vadd.f32 %v1075, %v1114
        %v1116 = vpop.f32.mrf.mxu0
        %v1117 = vadd.f32 %v1075, %v1116
        %v1118 = vpop.f32.mrf.mxu0
        %v1119 = vpop.f32.mrf.mxu0
        %1120 = vdwg.mxu0
        %1121 = vst [vmem:[%s340] sm:$0xff] %v1115
        %1122 = vst [vmem:[%s340 + $0x8] sm:$0xff] %v1117
        %s1123 = sand.u32 %s226, 1
        %s1124 = scalar_lea.sflag [#allocation4], %s1123
        %s1125 = sand.u32 %s226, 1
        %s1126 = smul.addr %s1125, 16
        %s1127 = scalar_lea.vmem [#allocation5], %s1126
        // Predicated region
        $region61: #{tpu_custom_call.1} parent=55 // pred_check
          %p1128 = pneg %p236
        $region62: #{tpu_custom_call.1} parent=55 // pred_check_branch
          %1130 = sbr.rel (%p1128) target = $region64
        $region63: #{tpu_custom_call.1} parent=55 // pred_region
          %s1132 = ssub.s32 256, 256
          %1133 = vsyncadd %s1124, %s1132
          %s1134 = smul.addr %s24, 2
          %s1135 = smul.addr %s1134, 128
          %s1136 = scalar_lea.hbm %s9, %s1135
          %s1138 = sshll.u32 %s1127, 4
          %s1139 = int_to_ptr.vmem [resolvable:$true] %s1138
          %1141 = dma.vmem_to_hbm [thread:$0]  %s1139, 256, %s1136, %s1124
        $region64: #{tpu_custom_call.1} parent=55 // pred_fallthru
          _
      $region56: #{tpu_custom_call.1} parent=5 // pred_fallthru
        _
      %p1142 = scmp.le.s32.totalorder 2, %s19
      // Predicated region
      $region65: #{tpu_custom_call.1} parent=5 // pred_check
        %p1143 = pneg %p1142
      $region66: #{tpu_custom_call.1} parent=5 // pred_check_branch
        %1145 = sbr.rel (%p1143) target = $region68
      $region67: #{tpu_custom_call.1} parent=5 // pred_region
        %s1146 = ssub.s32 %s19, 2
        // Predicated region
        $region69: #{tpu_custom_call.1} parent=67 // pred_check
          %p1147 = pneg %p242
        $region70: #{tpu_custom_call.1} parent=67 // pred_check_branch
          %1149 = sbr.rel (%p1147) target = $region72
        $region71: #{tpu_custom_call.1} parent=67 // pred_region
          %s1150 = sand.u32 %s227, 1
          %s1151 = scalar_lea.sflag [#allocation4], %s1150
          %s1152 = sand.u32 %s227, 1
          %s1153 = smul.addr %s1152, 16
          %s1154 = scalar_lea.vmem [#allocation5], %s1153
          %1155 = dma.done %s1151, 256
        $region72: #{tpu_custom_call.1} parent=67 // pred_fallthru
          _
      $region68: #{tpu_custom_call.1} parent=5 // pred_fallthru
        _
    $region6: #{tpu_custom_call.1} parent=1 // loop_footer
      %s23 = sadd.s32 1, %s19
    $region7: #{tpu_custom_call.1} parent=1 // loop_footer_branch
      %18 = sbr.rel target = $region3
    $region8: #{tpu_custom_call.1} parent=1 // loop_exit
      _
    %1156 = vsyncpa [#allocation3], 1
    %s1157 = scalar_lea.sflag [#allocation3], 1
    %1158 = vsyncpa %s1157, 1
    %1159 = vsyncpa [#allocation4], 1
    %s1160 = scalar_lea.sflag [#allocation4], 1
    %1161 = vsyncpa %s1160, 1

</llo_original>
